<compile_context>
chip_gen: v6e
topology: v6e:2x2x1
jax: 0.10.0
libtpu: 0.0.40
codegen_flags: <defaults>
</compile_context>

<pallas_src>
import math

import jax
import jax.numpy as jnp
import numpy as np
from jax.experimental import pallas as pl
from jax.experimental.pallas import tpu as pltpu


def smallcnn_kernel(x_ref, wbig_ref, bcb_ref, w1_ref, b1_ref, w2_ref, b2_ref, out_ref):
    # x_ref:    (TB, F*L)     input batch tile, native NCL flatten (index f*L + l)
    # wbig_ref: (F*L, 2*P*C)  block-diagonal conv weight, cols = [even pos | odd pos]
    # bcb_ref:  (1, 2*P*C)    conv bias broadcast over positions (f32)
    # w1_ref:   (P*C, H)      fc1 weight, rows ordered p*C + c (matches pooled slab)
    # b1_ref:   (1, H)        fc1 bias (f32)
    # w2_ref:   (H, K)        fc2 weight (transposed)
    # b2_ref:   (1, K)        fc2 bias (f32)
    # out_ref:  (TB, K)       softmax probabilities (f32)
    PC = w1_ref.shape[0]

    # ---- Conv1d(kernel_size=1) + bias + ReLU: one lane-dense matmul ----
    conv = jnp.dot(x_ref[...], wbig_ref[...],
                   preferred_element_type=jnp.float32)        # (TB, 2*P*C), f32 acc
    conv = jnp.maximum(conv + bcb_ref[...], 0.0)              # bias + ReLU (f32 VPU)

    # ---- MaxPool1d(2, 2): even half vs odd half, one vector max ----
    pooled = jnp.maximum(conv[:, :PC], conv[:, PC:])          # (TB, P*C), f32

    # ---- fc1 + ReLU ----
    h = jnp.dot(pooled.astype(w1_ref.dtype), w1_ref[...],
                preferred_element_type=jnp.float32)           # (TB, H)
    h = jnp.maximum(h + b1_ref[...], 0.0)

    # ---- fc2 + softmax (PyTorch dim=1), exact normalization ----
    logits = jnp.dot(h.astype(w2_ref.dtype), w2_ref[...],
                     preferred_element_type=jnp.float32) + b2_ref[...]   # (TB, K)
    m = jnp.max(logits, axis=1, keepdims=True)
    e = jnp.exp(logits - m)
    denom = jnp.sum(e, axis=1, keepdims=True)
    out_ref[...] = (e / denom).astype(out_ref.dtype)          # exact: rows sum to 1
    # NOTE: K=4 (<128 lanes) means masked partial stores for the output; volume is
    # tiny (B*4 f32), so a lane-dense transposed output is not worth it without a trace.


def smallcnn_forward(x_ncl, params, *, compute_dtype=jnp.bfloat16, batch_tile=1024):
    """x_ncl: (B, num_features, input_length), matching the PyTorch module's NCL input.

    compute_dtype: dtype fed to the MXU (weights + matmul-input activations, and the
      activation HBM->VMEM DMA).  bf16 (default) halves activation bytes and is native
      on the MXU of v5e/v6e/v7x; f32 accumulation and f32 elementwise are kept either
      way.  Pass jnp.float32 for bit-accurate results.
    batch_tile: batch rows per grid step (multiple of 8).  The primary tuning knob.
    """
    wc, bc, w1, b1, w2, b2 = params
    B, Fdim, L = x_ncl.shape
    C, _, ksize = wc.shape
    assert ksize == 1, "kernel specialized for kernel_size=1 (the module default)"
    conv_len = L - ksize + 1
    P = conv_len // 2          # MaxPool1d(2,2) drops a trailing odd position (as PyTorch)
    H = w1.shape[0]
    K = w2.shape[0]
    PC = P * C

    # --- wrapper-side layout plumbing (one-time, plain JAX) ---
    # Native contiguous flatten of the NCL input: index f*L + l.  No transpose.
    x_flat = x_ncl.reshape(B, Fdim * L).astype(compute_dtype)

    # Block-diagonal conv weight: column q*C + c reads input position l_q with wc[c, :],
    # where slots q < P are even positions 2q and slots q >= P are odd positions 2(q-P)+1.
    pos = np.zeros((L, 2 * P), np.float32)
    for p in range(P):
        pos[2 * p, p] = 1.0
        pos[2 * p + 1, P + p] = 1.0
    wbig = (jnp.einsum("lq,cf->flqc", jnp.asarray(pos), wc[:, :, 0])
            .reshape(Fdim * L, 2 * PC).astype(compute_dtype))            # (F*L, 2*P*C)
    bcb = jnp.tile(bc, 2 * P).reshape(1, 2 * PC).astype(jnp.float32)

    # PyTorch's x.view(B, -1) on (B, C, P) flattens as c*P + p; reorder fc1 weight so its
    # rows are p*C + c, matching the kernel's pooled-slab ordering.
    w1_flat = (jnp.transpose(w1.reshape(H, C, P), (2, 1, 0))
               .reshape(PC, H).astype(compute_dtype))                     # (P*C, H)
    b1b = b1.reshape(1, H).astype(jnp.float32)
    w2t = jnp.transpose(w2, (1, 0)).astype(compute_dtype)                 # (H, K)
    b2b = b2.reshape(1, K).astype(jnp.float32)

    TB = min(B, batch_tile)
    grid = (pl.cdiv(B, TB),)
    const2 = lambda i: (0, 0)

    itemsize = jnp.dtype(compute_dtype).itemsize
    cost = pl.CostEstimate(
        flops=2 * B * (Fdim * L * 2 * PC + PC * H + H * K),
        transcendentals=B * K,
        bytes_accessed=(B * Fdim * L * itemsize
                        + (Fdim * L * 2 * PC + PC * H + H * K) * itemsize
                        + B * K * 4),
    )

    return pl.pallas_call(
        smallcnn_kernel,
        out_shape=jax.ShapeDtypeStruct((B, K), jnp.float32),
        grid=grid,
        in_specs=[
            pl.BlockSpec((TB, Fdim * L), lambda i: (i, 0)),   # batch-tiled input
            pl.BlockSpec((Fdim * L, 2 * PC), const2),         # weights/biases: constant
            pl.BlockSpec((1, 2 * PC), const2),                # index maps -> VMEM-resident
            pl.BlockSpec((PC, H), const2),                    # across grid steps
            pl.BlockSpec((1, H), const2),
            pl.BlockSpec((H, K), const2),
            pl.BlockSpec((1, K), const2),
        ],
        out_specs=pl.BlockSpec((TB, K), lambda i: (i, 0)),
        compiler_params=pltpu.CompilerParams(
            dimension_semantics=("parallel",)),               # shard batch axis (v7x 2 TCs)
        cost_estimate=cost,
    )(x_flat, wbig, bcb, w1_flat, b1b, w2t, b2b)


def init_params(key, input_length, num_features, conv_channels=5, kernel_size=1,
                hidden_size=32, num_classes=4):
    """Deterministic PyTorch-default-style (uniform +-1/sqrt(fan_in)) init."""
    conv_out = input_length - kernel_size + 1
    pool_out = conv_out // 2
    ks = jax.random.split(key, 6)

    def u(k, shape, fan_in):
        bound = 1.0 / math.sqrt(fan_in)
        return jax.random.uniform(k, shape, jnp.float32, -bound, bound)

    wc = u(ks[0], (conv_channels, num_features, kernel_size), num_features * kernel_size)
    bc = u(ks[1], (conv_channels,), num_features * kernel_size)
    w1 = u(ks[2], (hidden_size, conv_channels * pool_out), conv_channels * pool_out)
    b1 = u(ks[3], (hidden_size,), conv_channels * pool_out)
    w2 = u(ks[4], (num_classes, hidden_size), hidden_size)
    b2 = u(ks[5], (num_classes,), hidden_size)
    return (wc, bc, w1, b1, w2, b2)


def ref_forward(x_ncl, params):
    """Pure-JAX reference mirroring the PyTorch forward exactly (NCL layout, f32)."""
    wc, bc, w1, b1, w2, b2 = params
    conv = jnp.einsum("bfl,cf->bcl", x_ncl, wc[:, :, 0]) + bc[None, :, None]
    conv = jnp.maximum(conv, 0.0)
    B, C, L = conv.shape
    pooled = jnp.max(conv[:, :, : (L // 2) * 2].reshape(B, C, L // 2, 2), axis=-1)
    flat = pooled.reshape(B, -1)
    h = jnp.maximum(flat @ w1.T + b1[None], 0.0)
    logits = h @ w2.T + b2[None]
    return jax.nn.softmax(logits, axis=1)


if __name__ == "__main__":
    B, num_features, input_length = 2, 4, 16
    key = jax.random.PRNGKey(0)
    kx, kp = jax.random.split(key)

    x = jax.random.normal(kx, (B, num_features, input_length), jnp.float32)  # PyTorch NCL
    params = init_params(kp, input_length=input_length, num_features=num_features)

    ref = ref_forward(x, params)

    # f32 matmul-input path: bit-near-exact vs the JAX reference.
    out_f32 = jax.block_until_ready(
        smallcnn_forward(x, params, compute_dtype=jnp.float32))
    assert out_f32.shape == (B, 4)
    np.testing.assert_allclose(np.asarray(out_f32), np.asarray(ref), rtol=1e-4, atol=1e-5)
    np.testing.assert_allclose(np.asarray(out_f32).sum(axis=1), np.ones(B),
                               rtol=1e-5, atol=1e-5)

    # Default bf16 matmul-input path (f32 accumulation & elementwise); softmax rows still
    # sum to 1 exactly up to f32 rounding because normalization uses an exact divide.
    out_bf16 = jax.block_until_ready(smallcnn_forward(x, params))
    np.testing.assert_allclose(np.asarray(out_bf16), np.asarray(ref), rtol=5e-2, atol=5e-2)
    np.testing.assert_allclose(np.asarray(out_bf16).sum(axis=1), np.ones(B),
                               rtol=1e-5, atol=1e-5)

    print("KERNEL_OK")
</pallas_src>

<mosaic_0001>
module attributes {stable_mosaic.version = 11 : i64} {
  func.func @smallcnn_kernel(%arg0: i32, %arg1: memref<2x64xf32, #tpu.memory_space<vmem>>, %arg2: memref<64x80xf32, #tpu.memory_space<vmem>>, %arg3: memref<1x80xf32, #tpu.memory_space<vmem>>, %arg4: memref<40x32xf32, #tpu.memory_space<vmem>>, %arg5: memref<1x32xf32, #tpu.memory_space<vmem>>, %arg6: memref<32x4xf32, #tpu.memory_space<vmem>>, %arg7: memref<1x4xf32, #tpu.memory_space<vmem>>, %arg8: memref<2x4xf32, #tpu.memory_space<vmem>>) attributes {dimension_semantics = [#tpu.dimension_semantics<parallel>], iteration_bounds = array<i64: 1>, scalar_prefetch = 0 : i64, scratch_operands = 0 : i64, tpu.core_type = #tpu.core_type<tc>, window_params = [{transform_indices = @transform_0, window_bounds = array<i64: 2, 64>}, {pipeline_mode = #tpu.pipeline_mode<synchronous>, transform_indices = @transform_1, window_bounds = array<i64: 64, 80>}, {pipeline_mode = #tpu.pipeline_mode<synchronous>, transform_indices = @transform_2, window_bounds = array<i64: 1, 80>}, {pipeline_mode = #tpu.pipeline_mode<synchronous>, transform_indices = @transform_3, window_bounds = array<i64: 40, 32>}, {pipeline_mode = #tpu.pipeline_mode<synchronous>, transform_indices = @transform_4, window_bounds = array<i64: 1, 32>}, {pipeline_mode = #tpu.pipeline_mode<synchronous>, transform_indices = @transform_5, window_bounds = array<i64: 32, 4>}, {pipeline_mode = #tpu.pipeline_mode<synchronous>, transform_indices = @transform_6, window_bounds = array<i64: 1, 4>}, {transform_indices = @transform_7, window_bounds = array<i64: 2, 4>}]} {
    %c0 = arith.constant 0 : index
    %c0_0 = arith.constant 0 : index
    %0 = vector.load %arg1[%c0, %c0_0] : memref<2x64xf32, #tpu.memory_space<vmem>>, vector<2x64xf32>
    %c0_1 = arith.constant 0 : index
    %c0_2 = arith.constant 0 : index
    %1 = vector.load %arg2[%c0_1, %c0_2] : memref<64x80xf32, #tpu.memory_space<vmem>>, vector<64x80xf32>
    %cst = arith.constant dense<0.000000e+00> : vector<2x80xf32>
    %2 = tpu.matmul %0, %1, %cst {dimension_numbers = #tpu.dot_dimension_numbers<[1], [0], [0], [1], [0, 0, 1, 1], [], []>} : vector<2x64xf32>, vector<64x80xf32>, vector<2x80xf32> -> vector<2x80xf32>
    %c0_3 = arith.constant 0 : index
    %c0_4 = arith.constant 0 : index
    %3 = vector.load %arg3[%c0_3, %c0_4] : memref<1x80xf32, #tpu.memory_space<vmem>>, vector<1x80xf32>
    %4 = vector.broadcast %3 : vector<1x80xf32> to vector<2x80xf32>
    %5 = arith.addf %2, %4 : vector<2x80xf32>
    %cst_5 = arith.constant 0.000000e+00 : f32
    %6 = vector.broadcast %cst_5 : f32 to vector<2x80xf32>
    %7 = arith.maximumf %5, %6 : vector<2x80xf32>
    %8 = vector.extract_strided_slice %7 {offsets = [0, 0], sizes = [2, 40], strides = [1, 1]} : vector<2x80xf32> to vector<2x40xf32>
    %9 = vector.extract_strided_slice %7 {offsets = [0, 40], sizes = [2, 40], strides = [1, 1]} : vector<2x80xf32> to vector<2x40xf32>
    %10 = arith.maximumf %8, %9 : vector<2x40xf32>
    %c0_6 = arith.constant 0 : index
    %c0_7 = arith.constant 0 : index
    %11 = vector.load %arg4[%c0_6, %c0_7] : memref<40x32xf32, #tpu.memory_space<vmem>>, vector<40x32xf32>
    %cst_8 = arith.constant dense<0.000000e+00> : vector<2x32xf32>
    %12 = tpu.matmul %10, %11, %cst_8 {dimension_numbers = #tpu.dot_dimension_numbers<[1], [0], [0], [1], [0, 0, 1, 1], [], []>} : vector<2x40xf32>, vector<40x32xf32>, vector<2x32xf32> -> vector<2x32xf32>
    %c0_9 = arith.constant 0 : index
    %c0_10 = arith.constant 0 : index
    %13 = vector.load %arg5[%c0_9, %c0_10] : memref<1x32xf32, #tpu.memory_space<vmem>>, vector<1x32xf32>
    %14 = vector.broadcast %13 : vector<1x32xf32> to vector<2x32xf32>
    %15 = arith.addf %12, %14 : vector<2x32xf32>
    %cst_11 = arith.constant 0.000000e+00 : f32
    %16 = vector.broadcast %cst_11 : f32 to vector<2x32xf32>
    %17 = arith.maximumf %15, %16 : vector<2x32xf32>
    %c0_12 = arith.constant 0 : index
    %c0_13 = arith.constant 0 : index
    %18 = vector.load %arg6[%c0_12, %c0_13] : memref<32x4xf32, #tpu.memory_space<vmem>>, vector<32x4xf32>
    %cst_14 = arith.constant dense<0.000000e+00> : vector<2x4xf32>
    %19 = tpu.matmul %17, %18, %cst_14 {dimension_numbers = #tpu.dot_dimension_numbers<[1], [0], [0], [1], [0, 0, 1, 1], [], []>} : vector<2x32xf32>, vector<32x4xf32>, vector<2x4xf32> -> vector<2x4xf32>
    %c0_15 = arith.constant 0 : index
    %c0_16 = arith.constant 0 : index
    %20 = vector.load %arg7[%c0_15, %c0_16] : memref<1x4xf32, #tpu.memory_space<vmem>>, vector<1x4xf32>
    %21 = vector.broadcast %20 : vector<1x4xf32> to vector<2x4xf32>
    %22 = arith.addf %19, %21 : vector<2x4xf32>
    %cst_17 = arith.constant dense<0xFF800000> : vector<2xf32>
    %23 = vector.multi_reduction <maximumf>, %22, %cst_17 [1] : vector<2x4xf32> to vector<2xf32>
    %24 = vector.shape_cast %23 : vector<2xf32> to vector<2x1xf32>
    %25 = vector.broadcast %24 : vector<2x1xf32> to vector<2x4xf32>
    %26 = arith.subf %22, %25 : vector<2x4xf32>
    %27 = math.exp %26 : vector<2x4xf32>
    %cst_18 = arith.constant dense<0.000000e+00> : vector<2xf32>
    %28 = vector.multi_reduction <add>, %27, %cst_18 [1] : vector<2x4xf32> to vector<2xf32>
    %29 = vector.shape_cast %28 : vector<2xf32> to vector<2x1xf32>
    %30 = vector.broadcast %29 : vector<2x1xf32> to vector<2x4xf32>
    %31 = arith.divf %27, %30 : vector<2x4xf32>
    %c0_19 = arith.constant 0 : index
    %c0_20 = arith.constant 0 : index
    %32 = vector.load %arg8[%c0_19, %c0_20] : memref<2x4xf32, #tpu.memory_space<vmem>>, vector<2x4xf32>
    tpu.vector_store %arg8[%c0_19, %c0_20], %31 {strides = array<i32>} : memref<2x4xf32, #tpu.memory_space<vmem>>, vector<2x4xf32>,
    return
  }
  func.func @transform_0(%arg0: i32) -> (i32, i32) {
    %c0_i32 = arith.constant 0 : i32
    %c0_i32_0 = arith.constant 0 : i32
    return %arg0, %c0_i32 : i32, i32
  }
  func.func @transform_1(%arg0: i32) -> (i32, i32) {
    %c0_i32 = arith.constant 0 : i32
    %c0_i32_0 = arith.constant 0 : i32
    %c0_i32_1 = arith.constant 0 : i32
    return %c0_i32, %c0_i32_0 : i32, i32
  }
  func.func @transform_2(%arg0: i32) -> (i32, i32) {
    %c0_i32 = arith.constant 0 : i32
    %c0_i32_0 = arith.constant 0 : i32
    %c0_i32_1 = arith.constant 0 : i32
    return %c0_i32, %c0_i32_0 : i32, i32
  }
  func.func @transform_3(%arg0: i32) -> (i32, i32) {
    %c0_i32 = arith.constant 0 : i32
    %c0_i32_0 = arith.constant 0 : i32
    %c0_i32_1 = arith.constant 0 : i32
    return %c0_i32, %c0_i32_0 : i32, i32
  }
  func.func @transform_4(%arg0: i32) -> (i32, i32) {
    %c0_i32 = arith.constant 0 : i32
    %c0_i32_0 = arith.constant 0 : i32
    %c0_i32_1 = arith.constant 0 : i32
    return %c0_i32, %c0_i32_0 : i32, i32
  }
  func.func @transform_5(%arg0: i32) -> (i32, i32) {
    %c0_i32 = arith.constant 0 : i32
    %c0_i32_0 = arith.constant 0 : i32
    %c0_i32_1 = arith.constant 0 : i32
    return %c0_i32, %c0_i32_0 : i32, i32
  }
  func.func @transform_6(%arg0: i32) -> (i32, i32) {
    %c0_i32 = arith.constant 0 : i32
    %c0_i32_0 = arith.constant 0 : i32
    %c0_i32_1 = arith.constant 0 : i32
    return %c0_i32, %c0_i32_0 : i32, i32
  }
  func.func @transform_7(%arg0: i32) -> (i32, i32) {
    %c0_i32 = arith.constant 0 : i32
    %c0_i32_0 = arith.constant 0 : i32
    return %arg0, %c0_i32 : i32, i32
  }
}

</mosaic_0001>

<llo_original>
// kernel: tpu_custom_call.1
$region0: #{tpu_custom_call.1}
  #allocation0 [shape = 'u32[]', space=smem, size = 0x4, offset = 0x4, fixed_abs, tag = 'smem constant byte address 0x4 - core index']
  #allocation1 [shape = 'u32[144,128]{1,0:T(1,128)}', space=vmem, size = 0x12000, scoped, tag = 'internal scratch']
  %s0 = inlined_call_operand.vmem [shape: f32[2,64], index: 0, kind: input, shape index: {}]
  %s1 = inlined_call_operand.vmem [shape: f32[64,80], index: 1, kind: input, shape index: {}]
  %s2 = inlined_call_operand.vmem [shape: f32[1,80], index: 2, kind: input, shape index: {}]
  %s3 = inlined_call_operand.vmem [shape: f32[40,32], index: 3, kind: input, shape index: {}]
  %s4 = inlined_call_operand.vmem [shape: f32[1,32], index: 4, kind: input, shape index: {}]
  %s5 = inlined_call_operand.vmem [shape: f32[32,4], index: 5, kind: input, shape index: {}]
  %s6 = inlined_call_operand.vmem [shape: f32[1,4], index: 6, kind: input, shape index: {}]
  %s7 = inlined_call_operand.hbm [shape: f32[2,4], index: 7, kind: output, shape index: {}]
  %s8 = sld [smem:[#allocation0]]
  $region38: #{tpu_custom_call.1} parent=0
    _
  %s10 = ssub.s32 1, %s8
  %s11 = scalar_select 0, %s10, %s8
  $region1: #{tpu_custom_call.1} parent=0
    #allocation2 [shape = 'u8[1024]{0}', space=vmem, size = 0x400, scoped, tag = 'output window, operand 0, single buffered']
    #allocation3 [shape = 's32[1]{0}', space=sflag, size = 0x4, scoped, tag = 'scoped memory for tpu_custom_call.1']
    %12 = vsyncpa [#allocation3], 0
    // Predicated region
    $region2: #{tpu_custom_call.1} parent=1 // pred_check
      _
    $region3: #{tpu_custom_call.1} parent=1 // pred_check_branch
      %14 = sbr.rel (0) target = $region5
    $region4: #{tpu_custom_call.1} parent=1 // pred_region
      _
    $region5: #{tpu_custom_call.1} parent=1 // pred_fallthru
      _
    // Predicated region
    $region6: #{tpu_custom_call.1} parent=1 // pred_check
      _
    $region7: #{tpu_custom_call.1} parent=1 // pred_check_branch
      %16 = sbr.rel (0) target = $region9
    $region8: #{tpu_custom_call.1} parent=1 // pred_region
      _
    $region9: #{tpu_custom_call.1} parent=1 // pred_fallthru
      _
    // Predicated region
    $region10: #{tpu_custom_call.1} parent=1 // pred_check
      _
    $region11: #{tpu_custom_call.1} parent=1 // pred_check_branch
      %18 = sbr.rel (0) target = $region13
    $region12: #{tpu_custom_call.1} parent=1 // pred_region
      _
    $region13: #{tpu_custom_call.1} parent=1 // pred_fallthru
      _
    // Predicated region
    $region14: #{tpu_custom_call.1} parent=1 // pred_check
      _
    $region15: #{tpu_custom_call.1} parent=1 // pred_check_branch
      %20 = sbr.rel (0) target = $region17
    $region16: #{tpu_custom_call.1} parent=1 // pred_region
      _
    $region17: #{tpu_custom_call.1} parent=1 // pred_fallthru
      _
    // Predicated region
    $region18: #{tpu_custom_call.1} parent=1 // pred_check
      _
    $region19: #{tpu_custom_call.1} parent=1 // pred_check_branch
      %22 = sbr.rel (0) target = $region21
    $region20: #{tpu_custom_call.1} parent=1 // pred_region
      _
    $region21: #{tpu_custom_call.1} parent=1 // pred_fallthru
      _
    // Predicated region
    $region22: #{tpu_custom_call.1} parent=1 // pred_check
      _
    $region23: #{tpu_custom_call.1} parent=1 // pred_check_branch
      %24 = sbr.rel (0) target = $region25
    $region24: #{tpu_custom_call.1} parent=1 // pred_region
      _
    $region25: #{tpu_custom_call.1} parent=1 // pred_fallthru
      _
    // Predicated region
    $region26: #{tpu_custom_call.1} parent=1 // pred_check
      _
    $region27: #{tpu_custom_call.1} parent=1 // pred_check_branch
      %26 = sbr.rel (0) target = $region29
    $region28: #{tpu_custom_call.1} parent=1 // pred_region
      _
    $region29: #{tpu_custom_call.1} parent=1 // pred_fallthru
      _
    %v27 = vld [vmem:[%s0] sm:$0x3]
    %v28 = vld [vmem:[%s1] sm:$0xff]
    %v29 = vld [vmem:[%s1 + $0x8] sm:$0xff]
    %v30 = vld [vmem:[%s1 + $0x10] sm:$0xff]
    %v31 = vld [vmem:[%s1 + $0x18] sm:$0xff]
    %v32 = vld [vmem:[%s1 + $0x20] sm:$0xff]
    %v33 = vld [vmem:[%s1 + $0x28] sm:$0xff]
    %v34 = vld [vmem:[%s1 + $0x30] sm:$0xff]
    %v35 = vld [vmem:[%s1 + $0x38] sm:$0xff]
    %v36 = vld [vmem:[%s2] sm:$0x1]
    %v38 = vlaneseq
    %v39 = vshrl.u32 %v38, 7
    %v40 = vsub.s32 0, %v39
    %v41 = vrot.slane %v36, %v40
    %vm43 = vcmask 523264
    %v45 = vsel %vm43, %v27, 0
    %47 = vmatprep.subr.mxu0 0.0
    %48 = vmatpush1.msra.mxu0 0.0
    %49 = vmatprep.subr.mxu0 0.0
    %50 = vmatpush1.msra.mxu0 0.0
    %51 = vmatprep.subr.mxu0 0.0
    %52 = vmatpush1.msra.mxu0 0.0
    %53 = vmatprep.subr.mxu0 0.0
    %54 = vmatpush1.msra.mxu0 0.0
    %55 = vmatprep.subr.mxu0 0.0
    %56 = vmatpush1.msra.mxu0 0.0
    %57 = vmatprep.subr.mxu0 0.0
    %58 = vmatpush1.msra.mxu0 0.0
    %59 = vmatprep.subr.mxu0 0.0
    %60 = vmatpush1.msra.mxu0 0.0
    %61 = vmatprep.subr.mxu0 0.0
    %62 = vmatpush1.msra.mxu0 0.0
    %63 = vmatprep.subr.mxu0 0.0
    %64 = vmatpush1.msra.mxu0 %v35
    %65 = vmatprep.subr.mxu0 0.0
    %66 = vmatpush1.msra.mxu0 %v34
    %67 = vmatprep.subr.mxu0 0.0
    %68 = vmatpush1.msra.mxu0 %v33
    %69 = vmatprep.subr.mxu0 0.0
    %70 = vmatpush1.msra.mxu0 %v32
    %71 = vmatprep.subr.mxu0 0.0
    %72 = vmatpush1.msra.mxu0 %v31
    %73 = vmatprep.subr.mxu0 0.0
    %74 = vmatpush1.msra.mxu0 %v30
    %75 = vmatprep.subr.mxu0 0.0
    %76 = vmatpush1.msra.mxu0 %v29
    %77 = vmatprep.subr.mxu0 0.0
    %78 = vmatpush1.msra.mxu0 %v28
    %79 = vmatprep.subr.mxu0 0.0
    %80 = vmatpush2.msra.mxu0 0.0
    %81 = vmatprep.subr.mxu0 0.0
    %82 = vmatpush2.msra.mxu0 0.0
    %83 = vmatprep.subr.mxu0 0.0
    %84 = vmatpush2.msra.mxu0 0.0
    %85 = vmatprep.subr.mxu0 0.0
    %86 = vmatpush2.msra.mxu0 0.0
    %87 = vmatprep.subr.mxu0 0.0
    %88 = vmatpush2.msra.mxu0 0.0
    %89 = vmatprep.subr.mxu0 0.0
    %90 = vmatpush2.msra.mxu0 0.0
    %91 = vmatprep.subr.mxu0 0.0
    %92 = vmatpush2.msra.mxu0 0.0
    %93 = vmatprep.subr.mxu0 0.0
    %94 = vmatpush2.msra.mxu0 0.0
    %95 = vmatprep.subr.mxu0 0.0
    %96 = vmatpush2.msra.mxu0 0.0
    %97 = vmatprep.subr.mxu0 0.0
    %98 = vmatpush2.msra.mxu0 0.0
    %99 = vmatprep.subr.mxu0 0.0
    %100 = vmatpush2.msra.mxu0 0.0
    %101 = vmatprep.subr.mxu0 0.0
    %102 = vmatpush2.msra.mxu0 0.0
    %103 = vmatprep.subr.mxu0 0.0
    %104 = vmatpush2.msra.mxu0 0.0
    %105 = vmatprep.subr.mxu0 0.0
    %106 = vmatpush2.msra.mxu0 0.0
    %107 = vmatprep.subr.mxu0 0.0
    %108 = vmatpush2.msra.mxu0 0.0
    %109 = vmatprep.subr.mxu0 0.0
    %110 = vmatpush2.msra.mxu0 0.0
    %111 = vmatprep.mubr.f32.mxu0 0.0
    %112 = vmatmul.mubr.f32.gmra.mxu0 %v45
    %v113 = vpop.f32.mrf.mxu0
    %v114 = vadd.f32 %v41, %v113
    %v115 = vpop.f32.mrf.mxu0
    %116 = vdwg.mxu0
    %v117 = vmax.f32 %v114, 0.0
    %119 = vrot.lane.b32.xlu0 %v117, 88
    %v120 = vpop.permute.xlu0 %119
    %v122 = vmax.f32 %v117, %v120
    %v123 = vld [vmem:[%s3] sm:$0xff]
    %v124 = vld [vmem:[%s3 + $0x8] sm:$0xff]
    %v125 = vld [vmem:[%s3 + $0x10] sm:$0xff]
    %v126 = vld [vmem:[%s3 + $0x18] sm:$0xff]
    %v127 = vld [vmem:[%s3 + $0x20] sm:$0xff]
    %v128 = vld [vmem:[%s4] sm:$0x1]
    %v130 = vlaneseq
    %v131 = vshrl.u32 %v130, 7
    %v132 = vsub.s32 0, %v131
    %v133 = vrot.slane %v128, %v132
    %vm135 = vcmask 326656
    %v137 = vsel %vm135, %v122, 0
    %139 = vmatprep.subr.mxu0 0.0
    %140 = vmatpush1.msra.mxu0 0.0
    %141 = vmatprep.subr.mxu0 0.0
    %142 = vmatpush1.msra.mxu0 0.0
    %143 = vmatprep.subr.mxu0 0.0
    %144 = vmatpush1.msra.mxu0 0.0
    %145 = vmatprep.subr.mxu0 0.0
    %146 = vmatpush1.msra.mxu0 0.0
    %147 = vmatprep.subr.mxu0 0.0
    %148 = vmatpush1.msra.mxu0 0.0
    %149 = vmatprep.subr.mxu0 0.0
    %150 = vmatpush1.msra.mxu0 0.0
    %151 = vmatprep.subr.mxu0 0.0
    %152 = vmatpush1.msra.mxu0 0.0
    %153 = vmatprep.subr.mxu0 0.0
    %154 = vmatpush1.msra.mxu0 0.0
    %155 = vmatprep.subr.mxu0 0.0
    %156 = vmatpush1.msra.mxu0 0.0
    %157 = vmatprep.subr.mxu0 0.0
    %158 = vmatpush1.msra.mxu0 0.0
    %159 = vmatprep.subr.mxu0 0.0
    %160 = vmatpush1.msra.mxu0 0.0
    %161 = vmatprep.subr.mxu0 0.0
    %162 = vmatpush1.msra.mxu0 %v127
    %163 = vmatprep.subr.mxu0 0.0
    %164 = vmatpush1.msra.mxu0 %v126
    %165 = vmatprep.subr.mxu0 0.0
    %166 = vmatpush1.msra.mxu0 %v125
    %167 = vmatprep.subr.mxu0 0.0
    %168 = vmatpush1.msra.mxu0 %v124
    %169 = vmatprep.subr.mxu0 0.0
    %170 = vmatpush1.msra.mxu0 %v123
    %171 = vmatprep.subr.mxu0 0.0
    %172 = vmatpush2.msra.mxu0 0.0
    %173 = vmatprep.subr.mxu0 0.0
    %174 = vmatpush2.msra.mxu0 0.0
    %175 = vmatprep.subr.mxu0 0.0
    %176 = vmatpush2.msra.mxu0 0.0
    %177 = vmatprep.subr.mxu0 0.0
    %178 = vmatpush2.msra.mxu0 0.0
    %179 = vmatprep.subr.mxu0 0.0
    %180 = vmatpush2.msra.mxu0 0.0
    %181 = vmatprep.subr.mxu0 0.0
    %182 = vmatpush2.msra.mxu0 0.0
    %183 = vmatprep.subr.mxu0 0.0
    %184 = vmatpush2.msra.mxu0 0.0
    %185 = vmatprep.subr.mxu0 0.0
    %186 = vmatpush2.msra.mxu0 0.0
    %187 = vmatprep.subr.mxu0 0.0
    %188 = vmatpush2.msra.mxu0 0.0
    %189 = vmatprep.subr.mxu0 0.0
    %190 = vmatpush2.msra.mxu0 0.0
    %191 = vmatprep.subr.mxu0 0.0
    %192 = vmatpush2.msra.mxu0 0.0
    %193 = vmatprep.subr.mxu0 0.0
    %194 = vmatpush2.msra.mxu0 0.0
    %195 = vmatprep.subr.mxu0 0.0
    %196 = vmatpush2.msra.mxu0 0.0
    %197 = vmatprep.subr.mxu0 0.0
    %198 = vmatpush2.msra.mxu0 0.0
    %199 = vmatprep.subr.mxu0 0.0
    %200 = vmatpush2.msra.mxu0 0.0
    %201 = vmatprep.subr.mxu0 0.0
    %202 = vmatpush2.msra.mxu0 0.0
    %203 = vmatprep.mubr.f32.mxu0 0.0
    %204 = vmatmul.mubr.f32.gmra.mxu0 %v137
    %v205 = vpop.f32.mrf.mxu0
    %v206 = vadd.f32 %v133, %v205
    %v207 = vpop.f32.mrf.mxu0
    %208 = vdwg.mxu0
    %v209 = vmax.f32 %v206, 0.0
    %v210 = vld [vmem:[%s5] sm:$0xff]
    %v211 = vld [vmem:[%s5 + $0x8] sm:$0xff]
    %v212 = vld [vmem:[%s5 + $0x10] sm:$0xff]
    %v213 = vld [vmem:[%s5 + $0x18] sm:$0xff]
    %v214 = vld [vmem:[%s6] sm:$0x1]
    %v216 = vlaneseq
    %v217 = vshrl.u32 %v216, 7
    %v218 = vsub.s32 0, %v217
    %v219 = vrot.slane %v214, %v218
    %vm221 = vcmask 261120
    %v223 = vsel %vm221, %v209, 0
    %225 = vmatprep.subr.mxu0 0.0
    %226 = vmatpush1.msra.mxu0 0.0
    %227 = vmatprep.subr.mxu0 0.0
    %228 = vmatpush1.msra.mxu0 0.0
    %229 = vmatprep.subr.mxu0 0.0
    %230 = vmatpush1.msra.mxu0 0.0
    %231 = vmatprep.subr.mxu0 0.0
    %232 = vmatpush1.msra.mxu0 0.0
    %233 = vmatprep.subr.mxu0 0.0
    %234 = vmatpush1.msra.mxu0 0.0
    %235 = vmatprep.subr.mxu0 0.0
    %236 = vmatpush1.msra.mxu0 0.0
    %237 = vmatprep.subr.mxu0 0.0
    %238 = vmatpush1.msra.mxu0 0.0
    %239 = vmatprep.subr.mxu0 0.0
    %240 = vmatpush1.msra.mxu0 0.0
    %241 = vmatprep.subr.mxu0 0.0
    %242 = vmatpush1.msra.mxu0 0.0
    %243 = vmatprep.subr.mxu0 0.0
    %244 = vmatpush1.msra.mxu0 0.0
    %245 = vmatprep.subr.mxu0 0.0
    %246 = vmatpush1.msra.mxu0 0.0
    %247 = vmatprep.subr.mxu0 0.0
    %248 = vmatpush1.msra.mxu0 0.0
    %249 = vmatprep.subr.mxu0 0.0
    %250 = vmatpush1.msra.mxu0 %v213
    %251 = vmatprep.subr.mxu0 0.0
    %252 = vmatpush1.msra.mxu0 %v212
    %253 = vmatprep.subr.mxu0 0.0
    %254 = vmatpush1.msra.mxu0 %v211
    %255 = vmatprep.subr.mxu0 0.0
    %256 = vmatpush1.msra.mxu0 %v210
    %257 = vmatprep.subr.mxu0 0.0
    %258 = vmatpush2.msra.mxu0 0.0
    %259 = vmatprep.subr.mxu0 0.0
    %260 = vmatpush2.msra.mxu0 0.0
    %261 = vmatprep.subr.mxu0 0.0
    %262 = vmatpush2.msra.mxu0 0.0
    %263 = vmatprep.subr.mxu0 0.0
    %264 = vmatpush2.msra.mxu0 0.0
    %265 = vmatprep.subr.mxu0 0.0
    %266 = vmatpush2.msra.mxu0 0.0
    %267 = vmatprep.subr.mxu0 0.0
    %268 = vmatpush2.msra.mxu0 0.0
    %269 = vmatprep.subr.mxu0 0.0
    %270 = vmatpush2.msra.mxu0 0.0
    %271 = vmatprep.subr.mxu0 0.0
    %272 = vmatpush2.msra.mxu0 0.0
    %273 = vmatprep.subr.mxu0 0.0
    %274 = vmatpush2.msra.mxu0 0.0
    %275 = vmatprep.subr.mxu0 0.0
    %276 = vmatpush2.msra.mxu0 0.0
    %277 = vmatprep.subr.mxu0 0.0
    %278 = vmatpush2.msra.mxu0 0.0
    %279 = vmatprep.subr.mxu0 0.0
    %280 = vmatpush2.msra.mxu0 0.0
    %281 = vmatprep.subr.mxu0 0.0
    %282 = vmatpush2.msra.mxu0 0.0
    %283 = vmatprep.subr.mxu0 0.0
    %284 = vmatpush2.msra.mxu0 0.0
    %285 = vmatprep.subr.mxu0 0.0
    %286 = vmatpush2.msra.mxu0 0.0
    %287 = vmatprep.subr.mxu0 0.0
    %288 = vmatpush2.msra.mxu0 0.0
    %289 = vmatprep.mubr.f32.mxu0 0.0
    %290 = vmatmul.mubr.f32.gmra.mxu0 %v223
    %v291 = vpop.f32.mrf.mxu0
    %v292 = vadd.f32 %v219, %v291
    %v293 = vpop.f32.mrf.mxu0
    %294 = vdwg.mxu0
    %vm295 = vcmask 25600
    %v296 = vsel %vm295, %v292, -inf
    %297 = vmax.xlane.f32.xlu0 %v296
    %v298 = vpop.xlane.xlu0 %297
    %v299 = vsub.f32 %v292, %v298
    %v300 = vmul.f32 %v299, 1.442695
    %v301 = vpow.pop %v300
    %v302 = vsel %vm295, %v301, 0.0
    %303 = vadd.xlane.f32.xlu0 %v302
    %v304 = vpop.xlane.xlu0 %303
    %v305 = vrcp.pop %v304
    %v306 = vmul.f32 %v301, %v305
    %307 = vst.msk [vmem:[#allocation2] sm:$0x3] %vm295, %v306
    // Predicated region
    $region30: #{tpu_custom_call.1} parent=1 // pred_check
      _
    $region31: #{tpu_custom_call.1} parent=1 // pred_check_branch
      %309 = sbr.rel (0) target = $region33
    $region32: #{tpu_custom_call.1} parent=1 // pred_region
      %s311 = ssub.s32 32, 32
      %312 = vsyncadd [#allocation3], %s311
      %s314 = sshll.u32 [#allocation2], 4
      %s315 = int_to_ptr.vmem [resolvable:$true] %s314
      %317 = dma.vmem_to_hbm [thread:$0]  %s315, 32, %s7, [#allocation3]
    $region33: #{tpu_custom_call.1} parent=1 // pred_fallthru
      _
    // Predicated region
    $region34: #{tpu_custom_call.1} parent=1 // pred_check
      _
    $region35: #{tpu_custom_call.1} parent=1 // pred_check_branch
      %319 = sbr.rel (0) target = $region37
    $region36: #{tpu_custom_call.1} parent=1 // pred_region
      %320 = dma.done [#allocation3], 32
    $region37: #{tpu_custom_call.1} parent=1 // pred_fallthru
      _
    %321 = vsyncpa [#allocation3], 1

</llo_original>
